<compile_context>
chip_gen: v6e
topology: v6e:2x2x1
jax: 0.10.0
libtpu: 0.0.40
codegen_flags: <defaults>
</compile_context>

<pallas_src>
import functools

import jax
import jax.numpy as jnp
from jax.experimental import pallas as pl
from jax.experimental.pallas import tpu as pltpu


def _round_up(n, m):
    return ((n + m - 1) // m) * m


def _hash_mlp_kernel(x_ref,
                     w1_ref, b1_ref, w2_ref, b2_ref,
                     w3_ref, b3_ref, w4_ref, b4_ref,
                     w5_ref, b5_ref,
                     o_ref, *, groups, group_width):
    """Fused 5-layer hash MLP on one lane-packed batch tile.

    x_ref:   (block_rows, groups*in_dim)  -- `groups` batch elements per row
    w{1..4}: (groups*in, groups*out)      -- block-diagonal, sqrt(fan_in) folded in
    b{1..4}: (1, groups*out)
    w5_ref:  (1, groups*hidden)           -- final-layer weight row, tiled per group
    b5_ref:  (1, groups)
    o_ref:   (block_rows, groups)         -- one hash per packed batch element
    """
    h = x_ref[...]
    for w_ref, b_ref in ((w1_ref, b1_ref), (w2_ref, b2_ref),
                         (w3_ref, b3_ref), (w4_ref, b4_ref)):
        h = jnp.dot(h, w_ref[...], preferred_element_type=jnp.float32) + b_ref[...]
        h = jnp.maximum(h, 0.0)

    # Final (hidden -> 1) layer off the MXU: VPU multiply + per-group XLU sum.
    # IMPORTANT: sum only within each 32-lane group, never across groups.
    prod = h * w5_ref[...]
    parts = [
        jnp.sum(prod[:, g * group_width:(g + 1) * group_width],
                axis=-1, keepdims=True)
        for g in range(groups)
    ]
    y = parts[0] if groups == 1 else jnp.concatenate(parts, axis=-1)
    o_ref[...] = (y + b5_ref[...]).astype(o_ref.dtype)


def pack_hash_params(params):
    """One-time host-side prep: fold sqrt(fan_in) scales, build block-diag weights."""
    (w1, b1), (w2, b2), (w3, b3), (w4, b4), (w5, b5) = params
    in_dim, hid = w1.shape
    groups = max(1, 128 // max(in_dim, hid))   # pack G batch elems per 128 lanes

    def fold(w):  # (h * sqrt(fan_in)) @ W  ==  h @ (sqrt(fan_in) * W)
        return (w * jnp.sqrt(jnp.float32(w.shape[0]))).astype(jnp.float32)

    def bdiag(w):  # kron(I_G, W) keeps the G packed batch groups independent
        return jnp.kron(jnp.eye(groups, dtype=jnp.float32), fold(w))

    return dict(
        groups=groups, in_dim=in_dim, hidden=hid,
        w=[bdiag(w1), bdiag(w2), bdiag(w3), bdiag(w4)],
        b=[jnp.tile(b.astype(jnp.float32), (1, groups))
           for b in (b1, b2, b3, b4)],
        w5_row=jnp.tile(fold(w5).reshape(1, hid), (1, groups)),
        b5=jnp.tile(b5.astype(jnp.float32).reshape(1, 1), (1, groups)),
    )


def hash_function_forward(x, packed, *, block_rows=512):
    """x: (B, in_dim) float32; packed: output of pack_hash_params. Returns (B, 1)."""
    B, D = x.shape
    G, hid = packed["groups"], packed["hidden"]
    assert D == packed["in_dim"], (D, packed["in_dim"])

    rows = -(-B // G)                                       # packed rows needed
    block_rows = _round_up(min(block_rows, _round_up(rows, 8)), 8)
    padded_rows = _round_up(rows, block_rows)
    padded_B = padded_rows * G
    if padded_B != B:
        x = jnp.pad(x, ((0, padded_B - B), (0, 0)))
    x_packed = x.reshape(padded_rows, G * D)                # contiguous, free

    grid = (padded_rows // block_rows,)

    in_specs = [pl.BlockSpec((block_rows, G * D), lambda i: (i, 0))]
    flat = [x_packed]
    for w, b in zip(packed["w"], packed["b"]):
        in_specs.append(pl.BlockSpec(w.shape, lambda i: (0, 0)))
        in_specs.append(pl.BlockSpec(b.shape, lambda i: (0, 0)))
        flat.extend([w, b])
    in_specs.append(pl.BlockSpec(packed["w5_row"].shape, lambda i: (0, 0)))
    in_specs.append(pl.BlockSpec(packed["b5"].shape, lambda i: (0, 0)))
    flat.extend([packed["w5_row"], packed["b5"]])

    out_specs = pl.BlockSpec((block_rows, G), lambda i: (i, 0))

    kernel = functools.partial(_hash_mlp_kernel, groups=G, group_width=hid)

    out = pl.pallas_call(
        kernel,
        out_shape=jax.ShapeDtypeStruct((padded_rows, G), jnp.float32),
        grid_spec=pltpu.PrefetchScalarGridSpec(
            num_scalar_prefetch=0,
            grid=grid,
            in_specs=in_specs,
            out_specs=out_specs,
        ),
        compiler_params=pltpu.CompilerParams(
            dimension_semantics=("parallel",)),
    )(*flat)

    # packed row r, group g  <->  batch element r*G + g; row-major flatten
    # restores original batch order, then drop padding.
    return out.reshape(padded_B, 1)[:B]


def init_hash_params(key, input_dim, hidden_dim):
    """Deterministic init mirroring nn.Linear default: U(-1/sqrt(fan_in), +)."""
    dims = [(input_dim, hidden_dim),
            (hidden_dim, hidden_dim),
            (hidden_dim, hidden_dim),
            (hidden_dim, hidden_dim),
            (hidden_dim, 1)]
    params = []
    for (fan_in, fan_out) in dims:
        key, kw, kb = jax.random.split(key, 3)
        bound = 1.0 / (fan_in ** 0.5)
        w = jax.random.uniform(kw, (fan_in, fan_out), jnp.float32,
                               minval=-bound, maxval=bound)
        b = jax.random.uniform(kb, (1, fan_out), jnp.float32,
                               minval=-bound, maxval=bound)
        params.append((w, b))
    return params


def reference_forward(x, params):
    """Pure-JAX reference of the original (unpacked, unfolded) module in f32."""
    h = x
    for idx, (w, b) in enumerate(params):
        h = jnp.dot(h * (h.shape[-1] ** 0.5), w) + b
        if idx < len(params) - 1:
            h = jnp.maximum(h, 0.0)
    return h


if __name__ == "__main__":
    key = jax.random.PRNGKey(0)
    k_x, k_p = jax.random.split(key)

    batch = 1000        # non-multiple of the tile -> exercises padding path
    input_dim = 32      # input_shape
    hidden_dim = 32     # args.hash_hidden_dim

    x = jax.random.normal(k_x, (batch, input_dim), jnp.float32)
    params = init_hash_params(k_p, input_dim, hidden_dim)
    packed = pack_hash_params(params)

    out = hash_function_forward(x, packed, block_rows=64)   # grid = (4,)
    out = jax.block_until_ready(out)

    ref = reference_forward(x, params)
    assert out.shape == (batch, 1), out.shape
    assert jnp.allclose(out, ref, rtol=1e-3, atol=1e-3), \
        float(jnp.max(jnp.abs(out - ref)))

    print("KERNEL_OK")
</pallas_src>

<mosaic_0001>
module attributes {stable_mosaic.version = 11 : i64} {
  func.func @_hash_mlp_kernel(%arg0: i32, %arg1: memref<64x128xf32, #tpu.memory_space<vmem>>, %arg2: memref<128x128xf32, #tpu.memory_space<vmem>>, %arg3: memref<1x128xf32, #tpu.memory_space<vmem>>, %arg4: memref<128x128xf32, #tpu.memory_space<vmem>>, %arg5: memref<1x128xf32, #tpu.memory_space<vmem>>, %arg6: memref<128x128xf32, #tpu.memory_space<vmem>>, %arg7: memref<1x128xf32, #tpu.memory_space<vmem>>, %arg8: memref<128x128xf32, #tpu.memory_space<vmem>>, %arg9: memref<1x128xf32, #tpu.memory_space<vmem>>, %arg10: memref<1x128xf32, #tpu.memory_space<vmem>>, %arg11: memref<1x4xf32, #tpu.memory_space<vmem>>, %arg12: memref<64x4xf32, #tpu.memory_space<vmem>>) attributes {dimension_semantics = [#tpu.dimension_semantics<parallel>], iteration_bounds = array<i64: 4>, scalar_prefetch = 0 : i64, scratch_operands = 0 : i64, tpu.core_type = #tpu.core_type<tc>, window_params = [{transform_indices = @transform_0, window_bounds = array<i64: 64, 128>}, {pipeline_mode = #tpu.pipeline_mode<synchronous>, transform_indices = @transform_1, window_bounds = array<i64: 128, 128>}, {pipeline_mode = #tpu.pipeline_mode<synchronous>, transform_indices = @transform_2, window_bounds = array<i64: 1, 128>}, {pipeline_mode = #tpu.pipeline_mode<synchronous>, transform_indices = @transform_3, window_bounds = array<i64: 128, 128>}, {pipeline_mode = #tpu.pipeline_mode<synchronous>, transform_indices = @transform_4, window_bounds = array<i64: 1, 128>}, {pipeline_mode = #tpu.pipeline_mode<synchronous>, transform_indices = @transform_5, window_bounds = array<i64: 128, 128>}, {pipeline_mode = #tpu.pipeline_mode<synchronous>, transform_indices = @transform_6, window_bounds = array<i64: 1, 128>}, {pipeline_mode = #tpu.pipeline_mode<synchronous>, transform_indices = @transform_7, window_bounds = array<i64: 128, 128>}, {pipeline_mode = #tpu.pipeline_mode<synchronous>, transform_indices = @transform_8, window_bounds = array<i64: 1, 128>}, {pipeline_mode = #tpu.pipeline_mode<synchronous>, transform_indices = @transform_9, window_bounds = array<i64: 1, 128>}, {pipeline_mode = #tpu.pipeline_mode<synchronous>, transform_indices = @transform_10, window_bounds = array<i64: 1, 4>}, {transform_indices = @transform_11, window_bounds = array<i64: 64, 4>}]} {
    %c0 = arith.constant 0 : index
    %c0_0 = arith.constant 0 : index
    %0 = vector.load %arg1[%c0, %c0_0] : memref<64x128xf32, #tpu.memory_space<vmem>>, vector<64x128xf32>
    %c0_1 = arith.constant 0 : index
    %c0_2 = arith.constant 0 : index
    %1 = vector.load %arg2[%c0_1, %c0_2] : memref<128x128xf32, #tpu.memory_space<vmem>>, vector<128x128xf32>
    %cst = arith.constant dense<0.000000e+00> : vector<64x128xf32>
    %2 = tpu.matmul %0, %1, %cst {dimension_numbers = #tpu.dot_dimension_numbers<[1], [0], [0], [1], [0, 0, 1, 1], [], []>} : vector<64x128xf32>, vector<128x128xf32>, vector<64x128xf32> -> vector<64x128xf32>
    %c0_3 = arith.constant 0 : index
    %c0_4 = arith.constant 0 : index
    %3 = vector.load %arg3[%c0_3, %c0_4] : memref<1x128xf32, #tpu.memory_space<vmem>>, vector<1x128xf32>
    %4 = vector.broadcast %3 : vector<1x128xf32> to vector<64x128xf32>
    %5 = arith.addf %2, %4 : vector<64x128xf32>
    %cst_5 = arith.constant 0.000000e+00 : f32
    %6 = vector.broadcast %cst_5 : f32 to vector<64x128xf32>
    %7 = arith.maximumf %5, %6 : vector<64x128xf32>
    %c0_6 = arith.constant 0 : index
    %c0_7 = arith.constant 0 : index
    %8 = vector.load %arg4[%c0_6, %c0_7] : memref<128x128xf32, #tpu.memory_space<vmem>>, vector<128x128xf32>
    %cst_8 = arith.constant dense<0.000000e+00> : vector<64x128xf32>
    %9 = tpu.matmul %7, %8, %cst_8 {dimension_numbers = #tpu.dot_dimension_numbers<[1], [0], [0], [1], [0, 0, 1, 1], [], []>} : vector<64x128xf32>, vector<128x128xf32>, vector<64x128xf32> -> vector<64x128xf32>
    %c0_9 = arith.constant 0 : index
    %c0_10 = arith.constant 0 : index
    %10 = vector.load %arg5[%c0_9, %c0_10] : memref<1x128xf32, #tpu.memory_space<vmem>>, vector<1x128xf32>
    %11 = vector.broadcast %10 : vector<1x128xf32> to vector<64x128xf32>
    %12 = arith.addf %9, %11 : vector<64x128xf32>
    %cst_11 = arith.constant 0.000000e+00 : f32
    %13 = vector.broadcast %cst_11 : f32 to vector<64x128xf32>
    %14 = arith.maximumf %12, %13 : vector<64x128xf32>
    %c0_12 = arith.constant 0 : index
    %c0_13 = arith.constant 0 : index
    %15 = vector.load %arg6[%c0_12, %c0_13] : memref<128x128xf32, #tpu.memory_space<vmem>>, vector<128x128xf32>
    %cst_14 = arith.constant dense<0.000000e+00> : vector<64x128xf32>
    %16 = tpu.matmul %14, %15, %cst_14 {dimension_numbers = #tpu.dot_dimension_numbers<[1], [0], [0], [1], [0, 0, 1, 1], [], []>} : vector<64x128xf32>, vector<128x128xf32>, vector<64x128xf32> -> vector<64x128xf32>
    %c0_15 = arith.constant 0 : index
    %c0_16 = arith.constant 0 : index
    %17 = vector.load %arg7[%c0_15, %c0_16] : memref<1x128xf32, #tpu.memory_space<vmem>>, vector<1x128xf32>
    %18 = vector.broadcast %17 : vector<1x128xf32> to vector<64x128xf32>
    %19 = arith.addf %16, %18 : vector<64x128xf32>
    %cst_17 = arith.constant 0.000000e+00 : f32
    %20 = vector.broadcast %cst_17 : f32 to vector<64x128xf32>
    %21 = arith.maximumf %19, %20 : vector<64x128xf32>
    %c0_18 = arith.constant 0 : index
    %c0_19 = arith.constant 0 : index
    %22 = vector.load %arg8[%c0_18, %c0_19] : memref<128x128xf32, #tpu.memory_space<vmem>>, vector<128x128xf32>
    %cst_20 = arith.constant dense<0.000000e+00> : vector<64x128xf32>
    %23 = tpu.matmul %21, %22, %cst_20 {dimension_numbers = #tpu.dot_dimension_numbers<[1], [0], [0], [1], [0, 0, 1, 1], [], []>} : vector<64x128xf32>, vector<128x128xf32>, vector<64x128xf32> -> vector<64x128xf32>
    %c0_21 = arith.constant 0 : index
    %c0_22 = arith.constant 0 : index
    %24 = vector.load %arg9[%c0_21, %c0_22] : memref<1x128xf32, #tpu.memory_space<vmem>>, vector<1x128xf32>
    %25 = vector.broadcast %24 : vector<1x128xf32> to vector<64x128xf32>
    %26 = arith.addf %23, %25 : vector<64x128xf32>
    %cst_23 = arith.constant 0.000000e+00 : f32
    %27 = vector.broadcast %cst_23 : f32 to vector<64x128xf32>
    %28 = arith.maximumf %26, %27 : vector<64x128xf32>
    %c0_24 = arith.constant 0 : index
    %c0_25 = arith.constant 0 : index
    %29 = vector.load %arg10[%c0_24, %c0_25] : memref<1x128xf32, #tpu.memory_space<vmem>>, vector<1x128xf32>
    %30 = vector.broadcast %29 : vector<1x128xf32> to vector<64x128xf32>
    %31 = arith.mulf %28, %30 : vector<64x128xf32>
    %32 = vector.extract_strided_slice %31 {offsets = [0, 0], sizes = [64, 32], strides = [1, 1]} : vector<64x128xf32> to vector<64x32xf32>
    %cst_26 = arith.constant dense<0.000000e+00> : vector<64xf32>
    %33 = vector.multi_reduction <add>, %32, %cst_26 [1] : vector<64x32xf32> to vector<64xf32>
    %34 = vector.shape_cast %33 : vector<64xf32> to vector<64x1xf32>
    %35 = vector.extract_strided_slice %31 {offsets = [0, 32], sizes = [64, 32], strides = [1, 1]} : vector<64x128xf32> to vector<64x32xf32>
    %cst_27 = arith.constant dense<0.000000e+00> : vector<64xf32>
    %36 = vector.multi_reduction <add>, %35, %cst_27 [1] : vector<64x32xf32> to vector<64xf32>
    %37 = vector.shape_cast %36 : vector<64xf32> to vector<64x1xf32>
    %38 = vector.extract_strided_slice %31 {offsets = [0, 64], sizes = [64, 32], strides = [1, 1]} : vector<64x128xf32> to vector<64x32xf32>
    %cst_28 = arith.constant dense<0.000000e+00> : vector<64xf32>
    %39 = vector.multi_reduction <add>, %38, %cst_28 [1] : vector<64x32xf32> to vector<64xf32>
    %40 = vector.shape_cast %39 : vector<64xf32> to vector<64x1xf32>
    %41 = vector.extract_strided_slice %31 {offsets = [0, 96], sizes = [64, 32], strides = [1, 1]} : vector<64x128xf32> to vector<64x32xf32>
    %cst_29 = arith.constant dense<0.000000e+00> : vector<64xf32>
    %42 = vector.multi_reduction <add>, %41, %cst_29 [1] : vector<64x32xf32> to vector<64xf32>
    %43 = vector.shape_cast %42 : vector<64xf32> to vector<64x1xf32>
    %44 = tpu.concatenate %34, %37, %40, %43 in 1 : vector<64x1xf32>, vector<64x1xf32>, vector<64x1xf32>, vector<64x1xf32> -> vector<64x4xf32>
    %c0_30 = arith.constant 0 : index
    %c0_31 = arith.constant 0 : index
    %45 = vector.load %arg11[%c0_30, %c0_31] : memref<1x4xf32, #tpu.memory_space<vmem>>, vector<1x4xf32>
    %46 = vector.broadcast %45 : vector<1x4xf32> to vector<64x4xf32>
    %47 = arith.addf %44, %46 : vector<64x4xf32>
    %c0_32 = arith.constant 0 : index
    %c0_33 = arith.constant 0 : index
    %48 = vector.load %arg12[%c0_32, %c0_33] : memref<64x4xf32, #tpu.memory_space<vmem>>, vector<64x4xf32>
    tpu.vector_store %arg12[%c0_32, %c0_33], %47 {strides = array<i32>} : memref<64x4xf32, #tpu.memory_space<vmem>>, vector<64x4xf32>,
    return
  }
  func.func @transform_0(%arg0: i32) -> (i32, i32) {
    %c0_i32 = arith.constant 0 : i32
    %c0_i32_0 = arith.constant 0 : i32
    return %arg0, %c0_i32 : i32, i32
  }
  func.func @transform_1(%arg0: i32) -> (i32, i32) {
    %c0_i32 = arith.constant 0 : i32
    %c0_i32_0 = arith.constant 0 : i32
    %c0_i32_1 = arith.constant 0 : i32
    return %c0_i32, %c0_i32_0 : i32, i32
  }
  func.func @transform_2(%arg0: i32) -> (i32, i32) {
    %c0_i32 = arith.constant 0 : i32
    %c0_i32_0 = arith.constant 0 : i32
    %c0_i32_1 = arith.constant 0 : i32
    return %c0_i32, %c0_i32_0 : i32, i32
  }
  func.func @transform_3(%arg0: i32) -> (i32, i32) {
    %c0_i32 = arith.constant 0 : i32
    %c0_i32_0 = arith.constant 0 : i32
    %c0_i32_1 = arith.constant 0 : i32
    return %c0_i32, %c0_i32_0 : i32, i32
  }
  func.func @transform_4(%arg0: i32) -> (i32, i32) {
    %c0_i32 = arith.constant 0 : i32
    %c0_i32_0 = arith.constant 0 : i32
    %c0_i32_1 = arith.constant 0 : i32
    return %c0_i32, %c0_i32_0 : i32, i32
  }
  func.func @transform_5(%arg0: i32) -> (i32, i32) {
    %c0_i32 = arith.constant 0 : i32
    %c0_i32_0 = arith.constant 0 : i32
    %c0_i32_1 = arith.constant 0 : i32
    return %c0_i32, %c0_i32_0 : i32, i32
  }
  func.func @transform_6(%arg0: i32) -> (i32, i32) {
    %c0_i32 = arith.constant 0 : i32
    %c0_i32_0 = arith.constant 0 : i32
    %c0_i32_1 = arith.constant 0 : i32
    return %c0_i32, %c0_i32_0 : i32, i32
  }
  func.func @transform_7(%arg0: i32) -> (i32, i32) {
    %c0_i32 = arith.constant 0 : i32
    %c0_i32_0 = arith.constant 0 : i32
    %c0_i32_1 = arith.constant 0 : i32
    return %c0_i32, %c0_i32_0 : i32, i32
  }
  func.func @transform_8(%arg0: i32) -> (i32, i32) {
    %c0_i32 = arith.constant 0 : i32
    %c0_i32_0 = arith.constant 0 : i32
    %c0_i32_1 = arith.constant 0 : i32
    return %c0_i32, %c0_i32_0 : i32, i32
  }
  func.func @transform_9(%arg0: i32) -> (i32, i32) {
    %c0_i32 = arith.constant 0 : i32
    %c0_i32_0 = arith.constant 0 : i32
    %c0_i32_1 = arith.constant 0 : i32
    return %c0_i32, %c0_i32_0 : i32, i32
  }
  func.func @transform_10(%arg0: i32) -> (i32, i32) {
    %c0_i32 = arith.constant 0 : i32
    %c0_i32_0 = arith.constant 0 : i32
    %c0_i32_1 = arith.constant 0 : i32
    return %c0_i32, %c0_i32_0 : i32, i32
  }
  func.func @transform_11(%arg0: i32) -> (i32, i32) {
    %c0_i32 = arith.constant 0 : i32
    %c0_i32_0 = arith.constant 0 : i32
    return %arg0, %c0_i32 : i32, i32
  }
}

</mosaic_0001>

<llo_original>
// kernel: tpu_custom_call.1
$region0: #{tpu_custom_call.1}
  #allocation0 [shape = 'u32[]', space=smem, size = 0x4, offset = 0x4, fixed_abs, tag = 'smem constant byte address 0x4 - core index']
  #allocation1 [shape = 'u32[144,128]{1,0:T(1,128)}', space=vmem, size = 0x12000, scoped, tag = 'internal scratch']
  %s0 = inlined_call_operand.hbm [shape: f32[256,128], index: 0, kind: input, shape index: {}]
  %s1 = inlined_call_operand.hbm [shape: f32[128,128], index: 1, kind: input, shape index: {}]
  %s2 = inlined_call_operand.vmem [shape: f32[1,128], index: 2, kind: input, shape index: {}]
  %s3 = inlined_call_operand.hbm [shape: f32[128,128], index: 3, kind: input, shape index: {}]
  %s4 = inlined_call_operand.vmem [shape: f32[1,128], index: 4, kind: input, shape index: {}]
  %s5 = inlined_call_operand.hbm [shape: f32[128,128], index: 5, kind: input, shape index: {}]
  %s6 = inlined_call_operand.vmem [shape: f32[1,128], index: 6, kind: input, shape index: {}]
  %s7 = inlined_call_operand.hbm [shape: f32[128,128], index: 7, kind: input, shape index: {}]
  %s8 = inlined_call_operand.vmem [shape: f32[1,128], index: 8, kind: input, shape index: {}]
  %s9 = inlined_call_operand.vmem [shape: f32[1,128], index: 9, kind: input, shape index: {}]
  %s10 = inlined_call_operand.vmem [shape: f32[1,4], index: 10, kind: input, shape index: {}]
  %s11 = inlined_call_operand.vmem [shape: f32[256,4], index: 11, kind: output, shape index: {}]
  %s12 = sld [smem:[#allocation0]]
  $region97: #{tpu_custom_call.1} parent=0
    _
  %s14 = ssub.s32 1, %s12
  %s15 = scalar_select 0, %s14, %s12
  $region1: #{tpu_custom_call.1} parent=0
    #allocation2 [shape = 'u8[65536]{0}', space=vmem, size = 0x10000, scoped, tag = 'input window, operand 0']
    #allocation3 [shape = 's32[2]{0}', space=sflag, size = 0x8, scoped, tag = 'scoped memory for tpu_custom_call.1']
    #allocation4 [shape = 'u8[65536]{0}', space=vmem, size = 0x10000, scoped, tag = 'input window, operand 1, single buffered']
    #allocation5 [shape = 's32[1]{0}', space=sflag, size = 0x4, scoped, tag = 'scoped memory for tpu_custom_call.1']
    #allocation6 [shape = 'u8[65536]{0}', space=vmem, size = 0x10000, scoped, tag = 'input window, operand 3, single buffered']
    #allocation7 [shape = 'u8[65536]{0}', space=vmem, size = 0x10000, scoped, tag = 'input window, operand 5, single buffered']
    #allocation8 [shape = 's32[1]{0}', space=sflag, size = 0x4, scoped, tag = 'scoped memory for tpu_custom_call.1']
    #allocation9 [shape = 'u8[65536]{0}', space=vmem, size = 0x10000, scoped, tag = 'input window, operand 7, single buffered']
    %16 = vsyncpa [#allocation3], 0
    %s17 = scalar_lea.sflag [#allocation3], 1
    %18 = vsyncpa %s17, 0
    %19 = vsyncpa [#allocation5], 0
    %20 = vsyncpa [#allocation8], 0
    loop: start=0, step=1, limit=6
    $region2: #{tpu_custom_call.1} parent=1 // loop_pre_header
      _
    $region3: #{tpu_custom_call.1} parent=1 // loop_header
      %s22 = sphi 0, %s26
      %p23 = scmp.ge.s32.totalorder %s22, 6
      %s32 = sphi 0, %s34
      %s35 = sphi 0, %s32
      %s36 = sphi 0, %s35
      %s52 = sphi 0, %s36
      %s56 = sphi 0, %s56
      %s58 = sphi 0, %s56
      %s59 = sphi 0, %s58
      %s73 = sphi 0, %s59
      %s77 = sphi 0, %s77
      %s79 = sphi 0, %s77
      %s80 = sphi 0, %s79
      %s94 = sphi 0, %s80
      %s98 = sphi 0, %s98
      %s100 = sphi 0, %s98
      %s101 = sphi 0, %s100
      %s115 = sphi 0, %s101
      %s119 = sphi 0, %s119
      %s121 = sphi 0, %s119
      %s122 = sphi 0, %s121
      %s136 = sphi 0, %s122
      %s140 = sphi 0, %s140
      %s142 = sphi 0, %s140
      %s143 = sphi 0, %s142
      %s157 = sphi 0, %s143
      %s161 = sphi 0, %s161
      %s163 = sphi 0, %s161
      %s164 = sphi 0, %s163
      %s178 = sphi 0, %s164
      %s182 = sphi 0, %s182
      %s184 = sphi 0, %s182
      %s185 = sphi 0, %s184
      %s199 = sphi 0, %s185
      %s203 = sphi 0, %s203
      %s205 = sphi 0, %s203
      %s206 = sphi 0, %s205
      %s220 = sphi 0, %s206
      %s224 = sphi 0, %s224
      %s226 = sphi 0, %s224
      %s227 = sphi 0, %s226
      %s241 = sphi 0, %s227
      %s245 = sphi 0, %s245
      %s247 = sphi 0, %s245
      %s248 = sphi 0, %s247
      %s262 = sphi 0, %s248
      %s268 = sphi 0, %s270
      %s271 = sphi 0, %s268
      %s272 = sphi 0, %s271
      %s288 = sphi 0, %s272
    $region4: #{tpu_custom_call.1} parent=1 // loop_header_branch
      %25 = sbr.rel (%p23) target = $region8
    $region5: #{tpu_custom_call.1} parent=1 // loop_body
      %s27 = ssub.s32 %s22, 1
      %s28 = ssub.s32 %s22, 2
      %s29 = sadd.s32 %s22, 1
      %s30 = ssub.s32 %s22, %s29
      %p31 = scmp.eq.s32.totalorder %s30, 0
      %s33 = sadd.s32 %s32, 1
      %s34 = scalar_select %p31, %s32, %s33
      %p37 = pneg %p31
      %p38 = scmp.eq.s32.totalorder %s22, 3
      %p39 = por %p37, %p38
      %p40 = scmp.ne.s32.totalorder %s32, %s35
      %p41 = scmp.eq.s32.totalorder %s22, 0
      %p42 = por %p40, %p41
      %p43 = scmp.ne.s32.totalorder %s32, %s35
      %p44 = scmp.eq.s32.totalorder %s27, 3
      %p45 = por %p43, %p44
      %p46 = scmp.ne.s32.totalorder %s35, %s36
      %p47 = scmp.eq.s32.totalorder %s27, 0
      %p48 = por %p46, %p47
      %p49 = scmp.ne.s32.totalorder %s35, %s36
      %p50 = scmp.eq.s32.totalorder %s28, 3
      %p51 = por %p49, %p50
      %p53 = scmp.ne.s32.totalorder %s36, %s52
      %p54 = scmp.eq.s32.totalorder %s28, 0
      %p55 = por %p53, %p54
      %s57 = sadd.s32 %s56, 1
      %p60 = scmp.eq.s32.totalorder %s22, 3
      %p61 = scmp.ne.s32.totalorder %s56, %s58
      %p62 = scmp.eq.s32.totalorder %s22, 0
      %p63 = por %p61, %p62
      %p64 = scmp.ne.s32.totalorder %s56, %s58
      %p65 = scmp.eq.s32.totalorder %s27, 3
      %p66 = por %p64, %p65
      %p67 = scmp.ne.s32.totalorder %s58, %s59
      %p68 = scmp.eq.s32.totalorder %s27, 0
      %p69 = por %p67, %p68
      %p70 = scmp.ne.s32.totalorder %s58, %s59
      %p71 = scmp.eq.s32.totalorder %s28, 3
      %p72 = por %p70, %p71
      %p74 = scmp.ne.s32.totalorder %s59, %s73
      %p75 = scmp.eq.s32.totalorder %s28, 0
      %p76 = por %p74, %p75
      %s78 = sadd.s32 %s77, 1
      %p81 = scmp.eq.s32.totalorder %s22, 3
      %p82 = scmp.ne.s32.totalorder %s77, %s79
      %p83 = scmp.eq.s32.totalorder %s22, 0
      %p84 = por %p82, %p83
      %p85 = scmp.ne.s32.totalorder %s77, %s79
      %p86 = scmp.eq.s32.totalorder %s27, 3
      %p87 = por %p85, %p86
      %p88 = scmp.ne.s32.totalorder %s79, %s80
      %p89 = scmp.eq.s32.totalorder %s27, 0
      %p90 = por %p88, %p89
      %p91 = scmp.ne.s32.totalorder %s79, %s80
      %p92 = scmp.eq.s32.totalorder %s28, 3
      %p93 = por %p91, %p92
      %p95 = scmp.ne.s32.totalorder %s80, %s94
      %p96 = scmp.eq.s32.totalorder %s28, 0
      %p97 = por %p95, %p96
      %s99 = sadd.s32 %s98, 1
      %p102 = scmp.eq.s32.totalorder %s22, 3
      %p103 = scmp.ne.s32.totalorder %s98, %s100
      %p104 = scmp.eq.s32.totalorder %s22, 0
      %p105 = por %p103, %p104
      %p106 = scmp.ne.s32.totalorder %s98, %s100
      %p107 = scmp.eq.s32.totalorder %s27, 3
      %p108 = por %p106, %p107
      %p109 = scmp.ne.s32.totalorder %s100, %s101
      %p110 = scmp.eq.s32.totalorder %s27, 0
      %p111 = por %p109, %p110
      %p112 = scmp.ne.s32.totalorder %s100, %s101
      %p113 = scmp.eq.s32.totalorder %s28, 3
      %p114 = por %p112, %p113
      %p116 = scmp.ne.s32.totalorder %s101, %s115
      %p117 = scmp.eq.s32.totalorder %s28, 0
      %p118 = por %p116, %p117
      %s120 = sadd.s32 %s119, 1
      %p123 = scmp.eq.s32.totalorder %s22, 3
      %p124 = scmp.ne.s32.totalorder %s119, %s121
      %p125 = scmp.eq.s32.totalorder %s22, 0
      %p126 = por %p124, %p125
      %p127 = scmp.ne.s32.totalorder %s119, %s121
      %p128 = scmp.eq.s32.totalorder %s27, 3
      %p129 = por %p127, %p128
      %p130 = scmp.ne.s32.totalorder %s121, %s122
      %p131 = scmp.eq.s32.totalorder %s27, 0
      %p132 = por %p130, %p131
      %p133 = scmp.ne.s32.totalorder %s121, %s122
      %p134 = scmp.eq.s32.totalorder %s28, 3
      %p135 = por %p133, %p134
      %p137 = scmp.ne.s32.totalorder %s122, %s136
      %p138 = scmp.eq.s32.totalorder %s28, 0
      %p139 = por %p137, %p138
      %s141 = sadd.s32 %s140, 1
      %p144 = scmp.eq.s32.totalorder %s22, 3
      %p145 = scmp.ne.s32.totalorder %s140, %s142
      %p146 = scmp.eq.s32.totalorder %s22, 0
      %p147 = por %p145, %p146
      %p148 = scmp.ne.s32.totalorder %s140, %s142
      %p149 = scmp.eq.s32.totalorder %s27, 3
      %p150 = por %p148, %p149
      %p151 = scmp.ne.s32.totalorder %s142, %s143
      %p152 = scmp.eq.s32.totalorder %s27, 0
      %p153 = por %p151, %p152
      %p154 = scmp.ne.s32.totalorder %s142, %s143
      %p155 = scmp.eq.s32.totalorder %s28, 3
      %p156 = por %p154, %p155
      %p158 = scmp.ne.s32.totalorder %s143, %s157
      %p159 = scmp.eq.s32.totalorder %s28, 0
      %p160 = por %p158, %p159
      %s162 = sadd.s32 %s161, 1
      %p165 = scmp.eq.s32.totalorder %s22, 3
      %p166 = scmp.ne.s32.totalorder %s161, %s163
      %p167 = scmp.eq.s32.totalorder %s22, 0
      %p168 = por %p166, %p167
      %p169 = scmp.ne.s32.totalorder %s161, %s163
      %p170 = scmp.eq.s32.totalorder %s27, 3
      %p171 = por %p169, %p170
      %p172 = scmp.ne.s32.totalorder %s163, %s164
      %p173 = scmp.eq.s32.totalorder %s27, 0
      %p174 = por %p172, %p173
      %p175 = scmp.ne.s32.totalorder %s163, %s164
      %p176 = scmp.eq.s32.totalorder %s28, 3
      %p177 = por %p175, %p176
      %p179 = scmp.ne.s32.totalorder %s164, %s178
      %p180 = scmp.eq.s32.totalorder %s28, 0
      %p181 = por %p179, %p180
      %s183 = sadd.s32 %s182, 1
      %p186 = scmp.eq.s32.totalorder %s22, 3
      %p187 = scmp.ne.s32.totalorder %s182, %s184
      %p188 = scmp.eq.s32.totalorder %s22, 0
      %p189 = por %p187, %p188
      %p190 = scmp.ne.s32.totalorder %s182, %s184
      %p191 = scmp.eq.s32.totalorder %s27, 3
      %p192 = por %p190, %p191
      %p193 = scmp.ne.s32.totalorder %s184, %s185
      %p194 = scmp.eq.s32.totalorder %s27, 0
      %p195 = por %p193, %p194
      %p196 = scmp.ne.s32.totalorder %s184, %s185
      %p197 = scmp.eq.s32.totalorder %s28, 3
      %p198 = por %p196, %p197
      %p200 = scmp.ne.s32.totalorder %s185, %s199
      %p201 = scmp.eq.s32.totalorder %s28, 0
      %p202 = por %p200, %p201
      %s204 = sadd.s32 %s203, 1
      %p207 = scmp.eq.s32.totalorder %s22, 3
      %p208 = scmp.ne.s32.totalorder %s203, %s205
      %p209 = scmp.eq.s32.totalorder %s22, 0
      %p210 = por %p208, %p209
      %p211 = scmp.ne.s32.totalorder %s203, %s205
      %p212 = scmp.eq.s32.totalorder %s27, 3
      %p213 = por %p211, %p212
      %p214 = scmp.ne.s32.totalorder %s205, %s206
      %p215 = scmp.eq.s32.totalorder %s27, 0
      %p216 = por %p214, %p215
      %p217 = scmp.ne.s32.totalorder %s205, %s206
      %p218 = scmp.eq.s32.totalorder %s28, 3
      %p219 = por %p217, %p218
      %p221 = scmp.ne.s32.totalorder %s206, %s220
      %p222 = scmp.eq.s32.totalorder %s28, 0
      %p223 = por %p221, %p222
      %s225 = sadd.s32 %s224, 1
      %p228 = scmp.eq.s32.totalorder %s22, 3
      %p229 = scmp.ne.s32.totalorder %s224, %s226
      %p230 = scmp.eq.s32.totalorder %s22, 0
      %p231 = por %p229, %p230
      %p232 = scmp.ne.s32.totalorder %s224, %s226
      %p233 = scmp.eq.s32.totalorder %s27, 3
      %p234 = por %p232, %p233
      %p235 = scmp.ne.s32.totalorder %s226, %s227
      %p236 = scmp.eq.s32.totalorder %s27, 0
      %p237 = por %p235, %p236
      %p238 = scmp.ne.s32.totalorder %s226, %s227
      %p239 = scmp.eq.s32.totalorder %s28, 3
      %p240 = por %p238, %p239
      %p242 = scmp.ne.s32.totalorder %s227, %s241
      %p243 = scmp.eq.s32.totalorder %s28, 0
      %p244 = por %p242, %p243
      %s246 = sadd.s32 %s245, 1
      %p249 = scmp.eq.s32.totalorder %s22, 3
      %p250 = scmp.ne.s32.totalorder %s245, %s247
      %p251 = scmp.eq.s32.totalorder %s22, 0
      %p252 = por %p250, %p251
      %p253 = scmp.ne.s32.totalorder %s245, %s247
      %p254 = scmp.eq.s32.totalorder %s27, 3
      %p255 = por %p253, %p254
      %p256 = scmp.ne.s32.totalorder %s247, %s248
      %p257 = scmp.eq.s32.totalorder %s27, 0
      %p258 = por %p256, %p257
      %p259 = scmp.ne.s32.totalorder %s247, %s248
      %p260 = scmp.eq.s32.totalorder %s28, 3
      %p261 = por %p259, %p260
      %p263 = scmp.ne.s32.totalorder %s248, %s262
      %p264 = scmp.eq.s32.totalorder %s28, 0
      %p265 = por %p263, %p264
      %s266 = ssub.s32 %s22, %s29
      %p267 = scmp.eq.s32.totalorder %s266, 0
      %s269 = sadd.s32 %s268, 1
      %s270 = scalar_select %p267, %s268, %s269
      %p273 = pneg %p267
      %p274 = scmp.eq.s32.totalorder %s22, 3
      %p275 = por %p273, %p274
      %p276 = scmp.ne.s32.totalorder %s268, %s271
      %p277 = scmp.eq.s32.totalorder %s22, 0
      %p278 = por %p276, %p277
      %p279 = scmp.ne.s32.totalorder %s268, %s271
      %p280 = scmp.eq.s32.totalorder %s27, 3
      %p281 = por %p279, %p280
      %p282 = scmp.ne.s32.totalorder %s271, %s272
      %p283 = scmp.eq.s32.totalorder %s27, 0
      %p284 = por %p282, %p283
      %p285 = scmp.ne.s32.totalorder %s271, %s272
      %p286 = scmp.eq.s32.totalorder %s28, 3
      %p287 = por %p285, %p286
      %p289 = scmp.ne.s32.totalorder %s272, %s288
      %p290 = scmp.eq.s32.totalorder %s28, 0
      %p291 = por %p289, %p290
      %p292 = scmp.le.s32.totalorder 1, %s22
      %p293 = scmp.lt.s32.totalorder %s22, 5
      %p294 = pnand %p292, %p293
      %p295 = pneg %p294
      // Predicated region
      $region9: #{tpu_custom_call.1} parent=5 // pred_check
        _
      $region10: #{tpu_custom_call.1} parent=5 // pred_check_branch
        %297 = sbr.rel (%p294) target = $region12
      $region11: #{tpu_custom_call.1} parent=5 // pred_region
        %s298 = ssub.s32 %s22, 1
        // Predicated region
        $region13: #{tpu_custom_call.1} parent=11 // pred_check
          %p299 = pneg %p69
        $region14: #{tpu_custom_call.1} parent=11 // pred_check_branch
          %301 = sbr.rel (%p299) target = $region16
        $region15: #{tpu_custom_call.1} parent=11 // pred_region
          %s303 = ssub.s32 2048, 2048
          %304 = vsyncadd [#allocation5], %s303
          %s305 = sshll.u32 [#allocation4], 4
          %s306 = int_to_ptr.vmem [resolvable:$true] %s305
          %311 = dma.hbm_to_vmem [thread:$0]  %s1, 2048, %s306, [#allocation5], 128, 128, 8
        $region16: #{tpu_custom_call.1} parent=11 // pred_fallthru
          _
        // Predicated region
        $region17: #{tpu_custom_call.1} parent=11 // pred_check
          %p312 = pneg %p90
        $region18: #{tpu_custom_call.1} parent=11 // pred_check_branch
          %314 = sbr.rel (%p312) target = $region20
        $region19: #{tpu_custom_call.1} parent=11 // pred_region
          _
        $region20: #{tpu_custom_call.1} parent=11 // pred_fallthru
          _
        // Predicated region
        $region21: #{tpu_custom_call.1} parent=11 // pred_check
          %p315 = pneg %p111
        $region22: #{tpu_custom_call.1} parent=11 // pred_check_branch
          %317 = sbr.rel (%p315) target = $region24
        $region23: #{tpu_custom_call.1} parent=11 // pred_region
          %s319 = ssub.s32 2048, 2048
          %320 = vsyncadd [#allocation5], %s319
          %s321 = sshll.u32 [#allocation6], 4
          %s322 = int_to_ptr.vmem [resolvable:$true] %s321
          %327 = dma.hbm_to_vmem [thread:$0]  %s3, 2048, %s322, [#allocation5], 128, 128, 8
        $region24: #{tpu_custom_call.1} parent=11 // pred_fallthru
          _
        // Predicated region
        $region25: #{tpu_custom_call.1} parent=11 // pred_check
          %p328 = pneg %p132
        $region26: #{tpu_custom_call.1} parent=11 // pred_check_branch
          %330 = sbr.rel (%p328) target = $region28
        $region27: #{tpu_custom_call.1} parent=11 // pred_region
          _
        $region28: #{tpu_custom_call.1} parent=11 // pred_fallthru
          _
        // Predicated region
        $region29: #{tpu_custom_call.1} parent=11 // pred_check
          %p331 = pneg %p153
        $region30: #{tpu_custom_call.1} parent=11 // pred_check_branch
          %333 = sbr.rel (%p331) target = $region32
        $region31: #{tpu_custom_call.1} parent=11 // pred_region
          %s335 = ssub.s32 2048, 2048
          %336 = vsyncadd [#allocation8], %s335
          %s337 = sshll.u32 [#allocation7], 4
          %s338 = int_to_ptr.vmem [resolvable:$true] %s337
          %343 = dma.hbm_to_vmem [thread:$0]  %s5, 2048, %s338, [#allocation8], 128, 128, 8
        $region32: #{tpu_custom_call.1} parent=11 // pred_fallthru
          _
        // Predicated region
        $region33: #{tpu_custom_call.1} parent=11 // pred_check
          %p344 = pneg %p174
        $region34: #{tpu_custom_call.1} parent=11 // pred_check_branch
          %346 = sbr.rel (%p344) target = $region36
        $region35: #{tpu_custom_call.1} parent=11 // pred_region
          _
        $region36: #{tpu_custom_call.1} parent=11 // pred_fallthru
          _
        // Predicated region
        $region37: #{tpu_custom_call.1} parent=11 // pred_check
          %p347 = pneg %p195
        $region38: #{tpu_custom_call.1} parent=11 // pred_check_branch
          %349 = sbr.rel (%p347) target = $region40
        $region39: #{tpu_custom_call.1} parent=11 // pred_region
          %s351 = ssub.s32 2048, 2048
          %352 = vsyncadd [#allocation8], %s351
          %s353 = sshll.u32 [#allocation9], 4
          %s354 = int_to_ptr.vmem [resolvable:$true] %s353
          %359 = dma.hbm_to_vmem [thread:$0]  %s7, 2048, %s354, [#allocation8], 128, 128, 8
        $region40: #{tpu_custom_call.1} parent=11 // pred_fallthru
          _
        // Predicated region
        $region41: #{tpu_custom_call.1} parent=11 // pred_check
          %p360 = pneg %p216
        $region42: #{tpu_custom_call.1} parent=11 // pred_check_branch
          %362 = sbr.rel (%p360) target = $region44
        $region43: #{tpu_custom_call.1} parent=11 // pred_region
          _
        $region44: #{tpu_custom_call.1} parent=11 // pred_fallthru
          _
        // Predicated region
        $region45: #{tpu_custom_call.1} parent=11 // pred_check
          %p363 = pneg %p237
        $region46: #{tpu_custom_call.1} parent=11 // pred_check_branch
          %365 = sbr.rel (%p363) target = $region48
        $region47: #{tpu_custom_call.1} parent=11 // pred_region
          _
        $region48: #{tpu_custom_call.1} parent=11 // pred_fallthru
          _
        // Predicated region
        $region49: #{tpu_custom_call.1} parent=11 // pred_check
          %p366 = pneg %p258
        $region50: #{tpu_custom_call.1} parent=11 // pred_check_branch
          %368 = sbr.rel (%p366) target = $region52
        $region51: #{tpu_custom_call.1} parent=11 // pred_region
          _
        $region52: #{tpu_custom_call.1} parent=11 // pred_fallthru
          _
      $region12: #{tpu_custom_call.1} parent=5 // pred_fallthru
        _
      %p369 = scmp.lt.s32.totalorder %s22, 4
      // Predicated region
      $region53: #{tpu_custom_call.1} parent=5 // pred_check
        %p370 = pneg %p369
      $region54: #{tpu_custom_call.1} parent=5 // pred_check_branch
        %372 = sbr.rel (%p370) target = $region56
      $region55: #{tpu_custom_call.1} parent=5 // pred_region
        // Predicated region
        $region57: #{tpu_custom_call.1} parent=55 // pred_check
          %p373 = pneg %p42
        $region58: #{tpu_custom_call.1} parent=55 // pred_check_branch
          %375 = sbr.rel (%p373) target = $region60
        $region59: #{tpu_custom_call.1} parent=55 // pred_region
          %s376 = sand.u32 %s32, 1
          %s377 = scalar_lea.sflag [#allocation3], %s376
          %s378 = sand.u32 %s32, 1
          %s379 = smul.addr %s378, 64
          %s380 = scalar_lea.vmem [#allocation2], %s379
          %s381 = smul.u32 8, %s22
          %s383 = ssub.s32 1024, 1024
          %384 = vsyncadd %s377, %s383
          %s385 = smul.addr %s381, 128
          %s386 = scalar_lea.hbm %s0, %s385
          %s387 = sshll.u32 %s380, 4
          %s388 = int_to_ptr.vmem [resolvable:$true] %s387
          %393 = dma.hbm_to_vmem [thread:$0]  %s386, 1024, %s388, %s377, 128, 128, 8
        $region60: #{tpu_custom_call.1} parent=55 // pred_fallthru
          _
      $region56: #{tpu_custom_call.1} parent=5 // pred_fallthru
        _
      %p394 = scmp.le.s32.totalorder 1, %s22
      %p395 = scmp.lt.s32.totalorder %s22, 5
      %p396 = pnand %p394, %p395
      %p397 = pneg %p396
      // Predicated region
      $region61: #{tpu_custom_call.1} parent=5 // pred_check
        _
      $region62: #{tpu_custom_call.1} parent=5 // pred_check_branch
        %399 = sbr.rel (%p396) target = $region64
      $region63: #{tpu_custom_call.1} parent=5 // pred_region
        %s400 = ssub.s32 %s22, 1
        %s401 = sand.u32 %s35, 1
        %s402 = scalar_lea.sflag [#allocation3], %s401
        %s403 = sand.u32 %s35, 1
        %s404 = smul.addr %s403, 64
        %s405 = scalar_lea.vmem [#allocation2], %s404
        // Predicated region
        $region65: #{tpu_custom_call.1} parent=63 // pred_check
          %p406 = pneg %p48
        $region66: #{tpu_custom_call.1} parent=63 // pred_check_branch
          %408 = sbr.rel (%p406) target = $region68
        $region67: #{tpu_custom_call.1} parent=63 // pred_region
          %409 = dma.done %s402, 1024
        $region68: #{tpu_custom_call.1} parent=63 // pred_fallthru
          _
        // Predicated region
        $region69: #{tpu_custom_call.1} parent=63 // pred_check
          %p410 = pneg %p69
        $region70: #{tpu_custom_call.1} parent=63 // pred_check_branch
          %412 = sbr.rel (%p410) target = $region72
        $region71: #{tpu_custom_call.1} parent=63 // pred_region
          %413 = dma.done [#allocation5], 2048
        $region72: #{tpu_custom_call.1} parent=63 // pred_fallthru
          _
        // Predicated region
        $region73: #{tpu_custom_call.1} parent=63 // pred_check
          %p414 = pneg %p111
        $region74: #{tpu_custom_call.1} parent=63 // pred_check_branch
          %416 = sbr.rel (%p414) target = $region76
        $region75: #{tpu_custom_call.1} parent=63 // pred_region
          %417 = dma.done [#allocation5], 2048
        $region76: #{tpu_custom_call.1} parent=63 // pred_fallthru
          _
        // Predicated region
        $region77: #{tpu_custom_call.1} parent=63 // pred_check
          %p418 = pneg %p153
        $region78: #{tpu_custom_call.1} parent=63 // pred_check_branch
          %420 = sbr.rel (%p418) target = $region80
        $region79: #{tpu_custom_call.1} parent=63 // pred_region
          %421 = dma.done [#allocation8], 2048
        $region80: #{tpu_custom_call.1} parent=63 // pred_fallthru
          _
        // Predicated region
        $region81: #{tpu_custom_call.1} parent=63 // pred_check
          %p422 = pneg %p195
        $region82: #{tpu_custom_call.1} parent=63 // pred_check_branch
          %424 = sbr.rel (%p422) target = $region84
        $region83: #{tpu_custom_call.1} parent=63 // pred_region
          %425 = dma.done [#allocation8], 2048
        $region84: #{tpu_custom_call.1} parent=63 // pred_fallthru
          _
        %s426 = sand.u32 %s35, 1
        %s427 = scalar_lea.sflag [#allocation3], %s426
        %s428 = sand.u32 %s35, 1
        %s429 = smul.addr %s428, 64
        %s430 = scalar_lea.vmem [#allocation2], %s429
        %p431 = pneg %p48
        %p432 = pneg %p45
        %p433 = pneg %p69
        %p434 = pneg %p66
        %p435 = pneg %p90
        %p436 = pneg %p87
        %p437 = pneg %p111
        %p438 = pneg %p108
        %p439 = pneg %p132
        %p440 = pneg %p129
        %p441 = pneg %p153
        %p442 = pneg %p150
        %p443 = pneg %p174
        %p444 = pneg %p171
        %p445 = pneg %p195
        %p446 = pneg %p192
        %p447 = pneg %p216
        %p448 = pneg %p213
        %p449 = pneg %p237
        %p450 = pneg %p234
        %p451 = pneg %p258
        %p452 = pneg %p255
        %p453 = pneg %p284
        %p454 = pneg %p281
        %s455 = smul.u32 8, %s27
        %p456 = scmp.lt.s32.totalorder %s455, 31
        %s457 = scalar_select %p456, %s455, 31
        %s458 = smul.addr %s457, 8
        %s459 = scalar_lea.vmem %s11, %s458
        %s460 = smul.u32 8, %s27
        %s461 = smul.u32 8, %s27
        %p462 = scmp.lt.s32.totalorder %s461, 31
        %s463 = scalar_select %p462, %s461, 31
        %s464 = smul.addr %s463, 8
        %s465 = scalar_lea.vmem %s11, %s464
        %s466 = smul.u32 8, %s27
        %v467 = vld [vmem:[%s405] sm:$0xff]
        %v468 = vld [vmem:[%s405 + $0x8] sm:$0xff]
        %v469 = vld [vmem:[%s405 + $0x10] sm:$0xff]
        %v470 = vld [vmem:[%s405 + $0x18] sm:$0xff]
        %v471 = vld [vmem:[%s405 + $0x20] sm:$0xff]
        %v472 = vld [vmem:[%s405 + $0x28] sm:$0xff]
        %v473 = vld [vmem:[%s405 + $0x30] sm:$0xff]
        %v474 = vld [vmem:[%s405 + $0x38] sm:$0xff]
        %v475 = vld [vmem:[#allocation4] sm:$0xff]
        %v476 = vld [vmem:[#allocation4 + $0x8] sm:$0xff]
        %v477 = vld [vmem:[#allocation4 + $0x10] sm:$0xff]
        %v478 = vld [vmem:[#allocation4 + $0x18] sm:$0xff]
        %v479 = vld [vmem:[#allocation4 + $0x20] sm:$0xff]
        %v480 = vld [vmem:[#allocation4 + $0x28] sm:$0xff]
        %v481 = vld [vmem:[#allocation4 + $0x30] sm:$0xff]
        %v482 = vld [vmem:[#allocation4 + $0x38] sm:$0xff]
        %v483 = vld [vmem:[#allocation4 + $0x40] sm:$0xff]
        %v484 = vld [vmem:[#allocation4 + $0x48] sm:$0xff]
        %v485 = vld [vmem:[#allocation4 + $0x50] sm:$0xff]
        %v486 = vld [vmem:[#allocation4 + $0x58] sm:$0xff]
        %v487 = vld [vmem:[#allocation4 + $0x60] sm:$0xff]
        %v488 = vld [vmem:[#allocation4 + $0x68] sm:$0xff]
        %v489 = vld [vmem:[#allocation4 + $0x70] sm:$0xff]
        %v490 = vld [vmem:[#allocation4 + $0x78] sm:$0xff]
        %v491 = vld [vmem:[%s2] sm:$0x1]
        %v493 = vlaneseq
        %v494 = vshrl.u32 %v493, 7
        %v495 = vsub.s32 0, %v494
        %v496 = vrot.slane %v491, %v495
        %498 = vmatprep.subr.mxu0 0.0
        %499 = vmatpush1.msra.mxu0 %v490
        %500 = vmatprep.subr.mxu0 0.0
        %501 = vmatpush1.msra.mxu0 %v489
        %502 = vmatprep.subr.mxu0 0.0
        %503 = vmatpush1.msra.mxu0 %v488
        %504 = vmatprep.subr.mxu0 0.0
        %505 = vmatpush1.msra.mxu0 %v487
        %506 = vmatprep.subr.mxu0 0.0
        %507 = vmatpush1.msra.mxu0 %v486
        %508 = vmatprep.subr.mxu0 0.0
        %509 = vmatpush1.msra.mxu0 %v485
        %510 = vmatprep.subr.mxu0 0.0
        %511 = vmatpush1.msra.mxu0 %v484
        %512 = vmatprep.subr.mxu0 0.0
        %513 = vmatpush1.msra.mxu0 %v483
        %514 = vmatprep.subr.mxu0 0.0
        %515 = vmatpush1.msra.mxu0 %v482
        %516 = vmatprep.subr.mxu0 0.0
        %517 = vmatpush1.msra.mxu0 %v481
        %518 = vmatprep.subr.mxu0 0.0
        %519 = vmatpush1.msra.mxu0 %v480
        %520 = vmatprep.subr.mxu0 0.0
        %521 = vmatpush1.msra.mxu0 %v479
        %522 = vmatprep.subr.mxu0 0.0
        %523 = vmatpush1.msra.mxu0 %v478
        %524 = vmatprep.subr.mxu0 0.0
        %525 = vmatpush1.msra.mxu0 %v477
        %526 = vmatprep.subr.mxu0 0.0
        %527 = vmatpush1.msra.mxu0 %v476
        %528 = vmatprep.subr.mxu0 0.0
        %529 = vmatpush1.msra.mxu0 %v475
        %530 = vmatprep.subr.mxu0 0.0
        %531 = vmatpush2.msra.mxu0 0.0
        %532 = vmatprep.subr.mxu0 0.0
        %533 = vmatpush2.msra.mxu0 0.0
        %534 = vmatprep.subr.mxu0 0.0
        %535 = vmatpush2.msra.mxu0 0.0
        %536 = vmatprep.subr.mxu0 0.0
        %537 = vmatpush2.msra.mxu0 0.0
        %538 = vmatprep.subr.mxu0 0.0
        %539 = vmatpush2.msra.mxu0 0.0
        %540 = vmatprep.subr.mxu0 0.0
        %541 = vmatpush2.msra.mxu0 0.0
        %542 = vmatprep.subr.mxu0 0.0
        %543 = vmatpush2.msra.mxu0 0.0
        %544 = vmatprep.subr.mxu0 0.0
        %545 = vmatpush2.msra.mxu0 0.0
        %546 = vmatprep.subr.mxu0 0.0
        %547 = vmatpush2.msra.mxu0 0.0
        %548 = vmatprep.subr.mxu0 0.0
        %549 = vmatpush2.msra.mxu0 0.0
        %550 = vmatprep.subr.mxu0 0.0
        %551 = vmatpush2.msra.mxu0 0.0
        %552 = vmatprep.subr.mxu0 0.0
        %553 = vmatpush2.msra.mxu0 0.0
        %554 = vmatprep.subr.mxu0 0.0
        %555 = vmatpush2.msra.mxu0 0.0
        %556 = vmatprep.subr.mxu0 0.0
        %557 = vmatpush2.msra.mxu0 0.0
        %558 = vmatprep.subr.mxu0 0.0
        %559 = vmatpush2.msra.mxu0 0.0
        %560 = vmatprep.subr.mxu0 0.0
        %561 = vmatpush2.msra.mxu0 0.0
        %562 = vmatprep.mubr.f32.mxu0 0.0
        %563 = vmatmul.mubr.f32.gmra.mxu0 %v467
        %v564 = vpop.f32.mrf.mxu0
        %v565 = vadd.f32 %v496, %v564
        %v566 = vpop.f32.mrf.mxu0
        %567 = vmatprep.mubr.f32.mxu0 0.0
        %568 = vmatmul.mubr.f32.gmra.mxu0 %v468
        %v569 = vpop.f32.mrf.mxu0
        %v570 = vadd.f32 %v496, %v569
        %v571 = vpop.f32.mrf.mxu0
        %572 = vmatprep.mubr.f32.mxu0 0.0
        %573 = vmatmul.mubr.f32.gmra.mxu0 %v469
        %v574 = vpop.f32.mrf.mxu0
        %v575 = vadd.f32 %v496, %v574
        %v576 = vpop.f32.mrf.mxu0
        %577 = vmatprep.mubr.f32.mxu0 0.0
        %578 = vmatmul.mubr.f32.gmra.mxu0 %v470
        %v579 = vpop.f32.mrf.mxu0
        %v580 = vadd.f32 %v496, %v579
        %v581 = vpop.f32.mrf.mxu0
        %582 = vmatprep.mubr.f32.mxu0 0.0
        %583 = vmatmul.mubr.f32.gmra.mxu0 %v471
        %v584 = vpop.f32.mrf.mxu0
        %v585 = vadd.f32 %v496, %v584
        %v586 = vpop.f32.mrf.mxu0
        %587 = vmatprep.mubr.f32.mxu0 0.0
        %588 = vmatmul.mubr.f32.gmra.mxu0 %v472
        %v589 = vpop.f32.mrf.mxu0
        %v590 = vadd.f32 %v496, %v589
        %v591 = vpop.f32.mrf.mxu0
        %592 = vmatprep.mubr.f32.mxu0 0.0
        %593 = vmatmul.mubr.f32.gmra.mxu0 %v473
        %v594 = vpop.f32.mrf.mxu0
        %v595 = vadd.f32 %v496, %v594
        %v596 = vpop.f32.mrf.mxu0
        %597 = vmatprep.mubr.f32.mxu0 0.0
        %598 = vmatmul.mubr.f32.gmra.mxu0 %v474
        %v599 = vpop.f32.mrf.mxu0
        %v600 = vadd.f32 %v496, %v599
        %v601 = vpop.f32.mrf.mxu0
        %602 = vdwg.mxu0
        %v603 = vmax.f32 %v565, 0.0
        %v604 = vmax.f32 %v570, 0.0
        %v605 = vmax.f32 %v575, 0.0
        %v606 = vmax.f32 %v580, 0.0
        %v607 = vmax.f32 %v585, 0.0
        %v608 = vmax.f32 %v590, 0.0
        %v609 = vmax.f32 %v595, 0.0
        %v610 = vmax.f32 %v600, 0.0
        %v611 = vld [vmem:[#allocation6] sm:$0xff]
        %v612 = vld [vmem:[#allocation6 + $0x8] sm:$0xff]
        %v613 = vld [vmem:[#allocation6 + $0x10] sm:$0xff]
        %v614 = vld [vmem:[#allocation6 + $0x18] sm:$0xff]
        %v615 = vld [vmem:[#allocation6 + $0x20] sm:$0xff]
        %v616 = vld [vmem:[#allocation6 + $0x28] sm:$0xff]
        %v617 = vld [vmem:[#allocation6 + $0x30] sm:$0xff]
        %v618 = vld [vmem:[#allocation6 + $0x38] sm:$0xff]
        %v619 = vld [vmem:[#allocation6 + $0x40] sm:$0xff]
        %v620 = vld [vmem:[#allocation6 + $0x48] sm:$0xff]
        %v621 = vld [vmem:[#allocation6 + $0x50] sm:$0xff]
        %v622 = vld [vmem:[#allocation6 + $0x58] sm:$0xff]
        %v623 = vld [vmem:[#allocation6 + $0x60] sm:$0xff]
        %v624 = vld [vmem:[#allocation6 + $0x68] sm:$0xff]
        %v625 = vld [vmem:[#allocation6 + $0x70] sm:$0xff]
        %v626 = vld [vmem:[#allocation6 + $0x78] sm:$0xff]
        %v627 = vld [vmem:[%s4] sm:$0x1]
        %v629 = vlaneseq
        %v630 = vshrl.u32 %v629, 7
        %v631 = vsub.s32 0, %v630
        %v632 = vrot.slane %v627, %v631
        %634 = vmatprep.subr.mxu0 0.0
        %635 = vmatpush1.msra.mxu0 %v626
        %636 = vmatprep.subr.mxu0 0.0
        %637 = vmatpush1.msra.mxu0 %v625
        %638 = vmatprep.subr.mxu0 0.0
        %639 = vmatpush1.msra.mxu0 %v624
        %640 = vmatprep.subr.mxu0 0.0
        %641 = vmatpush1.msra.mxu0 %v623
        %642 = vmatprep.subr.mxu0 0.0
        %643 = vmatpush1.msra.mxu0 %v622
        %644 = vmatprep.subr.mxu0 0.0
        %645 = vmatpush1.msra.mxu0 %v621
        %646 = vmatprep.subr.mxu0 0.0
        %647 = vmatpush1.msra.mxu0 %v620
        %648 = vmatprep.subr.mxu0 0.0
        %649 = vmatpush1.msra.mxu0 %v619
        %650 = vmatprep.subr.mxu0 0.0
        %651 = vmatpush1.msra.mxu0 %v618
        %652 = vmatprep.subr.mxu0 0.0
        %653 = vmatpush1.msra.mxu0 %v617
        %654 = vmatprep.subr.mxu0 0.0
        %655 = vmatpush1.msra.mxu0 %v616
        %656 = vmatprep.subr.mxu0 0.0
        %657 = vmatpush1.msra.mxu0 %v615
        %658 = vmatprep.subr.mxu0 0.0
        %659 = vmatpush1.msra.mxu0 %v614
        %660 = vmatprep.subr.mxu0 0.0
        %661 = vmatpush1.msra.mxu0 %v613
        %662 = vmatprep.subr.mxu0 0.0
        %663 = vmatpush1.msra.mxu0 %v612
        %664 = vmatprep.subr.mxu0 0.0
        %665 = vmatpush1.msra.mxu0 %v611
        %666 = vmatprep.subr.mxu0 0.0
        %667 = vmatpush2.msra.mxu0 0.0
        %668 = vmatprep.subr.mxu0 0.0
        %669 = vmatpush2.msra.mxu0 0.0
        %670 = vmatprep.subr.mxu0 0.0
        %671 = vmatpush2.msra.mxu0 0.0
        %672 = vmatprep.subr.mxu0 0.0
        %673 = vmatpush2.msra.mxu0 0.0
        %674 = vmatprep.subr.mxu0 0.0
        %675 = vmatpush2.msra.mxu0 0.0
        %676 = vmatprep.subr.mxu0 0.0
        %677 = vmatpush2.msra.mxu0 0.0
        %678 = vmatprep.subr.mxu0 0.0
        %679 = vmatpush2.msra.mxu0 0.0
        %680 = vmatprep.subr.mxu0 0.0
        %681 = vmatpush2.msra.mxu0 0.0
        %682 = vmatprep.subr.mxu0 0.0
        %683 = vmatpush2.msra.mxu0 0.0
        %684 = vmatprep.subr.mxu0 0.0
        %685 = vmatpush2.msra.mxu0 0.0
        %686 = vmatprep.subr.mxu0 0.0
        %687 = vmatpush2.msra.mxu0 0.0
        %688 = vmatprep.subr.mxu0 0.0
        %689 = vmatpush2.msra.mxu0 0.0
        %690 = vmatprep.subr.mxu0 0.0
        %691 = vmatpush2.msra.mxu0 0.0
        %692 = vmatprep.subr.mxu0 0.0
        %693 = vmatpush2.msra.mxu0 0.0
        %694 = vmatprep.subr.mxu0 0.0
        %695 = vmatpush2.msra.mxu0 0.0
        %696 = vmatprep.subr.mxu0 0.0
        %697 = vmatpush2.msra.mxu0 0.0
        %698 = vmatprep.mubr.f32.mxu0 0.0
        %699 = vmatmul.mubr.f32.gmra.mxu0 %v603
        %v700 = vpop.f32.mrf.mxu0
        %v701 = vadd.f32 %v632, %v700
        %v702 = vpop.f32.mrf.mxu0
        %703 = vmatprep.mubr.f32.mxu0 0.0
        %704 = vmatmul.mubr.f32.gmra.mxu0 %v604
        %v705 = vpop.f32.mrf.mxu0
        %v706 = vadd.f32 %v632, %v705
        %v707 = vpop.f32.mrf.mxu0
        %708 = vmatprep.mubr.f32.mxu0 0.0
        %709 = vmatmul.mubr.f32.gmra.mxu0 %v605
        %v710 = vpop.f32.mrf.mxu0
        %v711 = vadd.f32 %v632, %v710
        %v712 = vpop.f32.mrf.mxu0
        %713 = vmatprep.mubr.f32.mxu0 0.0
        %714 = vmatmul.mubr.f32.gmra.mxu0 %v606
        %v715 = vpop.f32.mrf.mxu0
        %v716 = vadd.f32 %v632, %v715
        %v717 = vpop.f32.mrf.mxu0
        %718 = vmatprep.mubr.f32.mxu0 0.0
        %719 = vmatmul.mubr.f32.gmra.mxu0 %v607
        %v720 = vpop.f32.mrf.mxu0
        %v721 = vadd.f32 %v632, %v720
        %v722 = vpop.f32.mrf.mxu0
        %723 = vmatprep.mubr.f32.mxu0 0.0
        %724 = vmatmul.mubr.f32.gmra.mxu0 %v608
        %v725 = vpop.f32.mrf.mxu0
        %v726 = vadd.f32 %v632, %v725
        %v727 = vpop.f32.mrf.mxu0
        %728 = vmatprep.mubr.f32.mxu0 0.0
        %729 = vmatmul.mubr.f32.gmra.mxu0 %v609
        %v730 = vpop.f32.mrf.mxu0
        %v731 = vadd.f32 %v632, %v730
        %v732 = vpop.f32.mrf.mxu0
        %733 = vmatprep.mubr.f32.mxu0 0.0
        %734 = vmatmul.mubr.f32.gmra.mxu0 %v610
        %v735 = vpop.f32.mrf.mxu0
        %v736 = vadd.f32 %v632, %v735
        %v737 = vpop.f32.mrf.mxu0
        %738 = vdwg.mxu0
        %v739 = vmax.f32 %v701, 0.0
        %v740 = vmax.f32 %v706, 0.0
        %v741 = vmax.f32 %v711, 0.0
        %v742 = vmax.f32 %v716, 0.0
        %v743 = vmax.f32 %v721, 0.0
        %v744 = vmax.f32 %v726, 0.0
        %v745 = vmax.f32 %v731, 0.0
        %v746 = vmax.f32 %v736, 0.0
        %v747 = vld [vmem:[#allocation7] sm:$0xff]
        %v748 = vld [vmem:[#allocation7 + $0x8] sm:$0xff]
        %v749 = vld [vmem:[#allocation7 + $0x10] sm:$0xff]
        %v750 = vld [vmem:[#allocation7 + $0x18] sm:$0xff]
        %v751 = vld [vmem:[#allocation7 + $0x20] sm:$0xff]
        %v752 = vld [vmem:[#allocation7 + $0x28] sm:$0xff]
        %v753 = vld [vmem:[#allocation7 + $0x30] sm:$0xff]
        %v754 = vld [vmem:[#allocation7 + $0x38] sm:$0xff]
        %v755 = vld [vmem:[#allocation7 + $0x40] sm:$0xff]
        %v756 = vld [vmem:[#allocation7 + $0x48] sm:$0xff]
        %v757 = vld [vmem:[#allocation7 + $0x50] sm:$0xff]
        %v758 = vld [vmem:[#allocation7 + $0x58] sm:$0xff]
        %v759 = vld [vmem:[#allocation7 + $0x60] sm:$0xff]
        %v760 = vld [vmem:[#allocation7 + $0x68] sm:$0xff]
        %v761 = vld [vmem:[#allocation7 + $0x70] sm:$0xff]
        %v762 = vld [vmem:[#allocation7 + $0x78] sm:$0xff]
        %v763 = vld [vmem:[%s6] sm:$0x1]
        %v765 = vlaneseq
        %v766 = vshrl.u32 %v765, 7
        %v767 = vsub.s32 0, %v766
        %v768 = vrot.slane %v763, %v767
        %770 = vmatprep.subr.mxu0 0.0
        %771 = vmatpush1.msra.mxu0 %v762
        %772 = vmatprep.subr.mxu0 0.0
        %773 = vmatpush1.msra.mxu0 %v761
        %774 = vmatprep.subr.mxu0 0.0
        %775 = vmatpush1.msra.mxu0 %v760
        %776 = vmatprep.subr.mxu0 0.0
        %777 = vmatpush1.msra.mxu0 %v759
        %778 = vmatprep.subr.mxu0 0.0
        %779 = vmatpush1.msra.mxu0 %v758
        %780 = vmatprep.subr.mxu0 0.0
        %781 = vmatpush1.msra.mxu0 %v757
        %782 = vmatprep.subr.mxu0 0.0
        %783 = vmatpush1.msra.mxu0 %v756
        %784 = vmatprep.subr.mxu0 0.0
        %785 = vmatpush1.msra.mxu0 %v755
        %786 = vmatprep.subr.mxu0 0.0
        %787 = vmatpush1.msra.mxu0 %v754
        %788 = vmatprep.subr.mxu0 0.0
        %789 = vmatpush1.msra.mxu0 %v753
        %790 = vmatprep.subr.mxu0 0.0
        %791 = vmatpush1.msra.mxu0 %v752
        %792 = vmatprep.subr.mxu0 0.0
        %793 = vmatpush1.msra.mxu0 %v751
        %794 = vmatprep.subr.mxu0 0.0
        %795 = vmatpush1.msra.mxu0 %v750
        %796 = vmatprep.subr.mxu0 0.0
        %797 = vmatpush1.msra.mxu0 %v749
        %798 = vmatprep.subr.mxu0 0.0
        %799 = vmatpush1.msra.mxu0 %v748
        %800 = vmatprep.subr.mxu0 0.0
        %801 = vmatpush1.msra.mxu0 %v747
        %802 = vmatprep.subr.mxu0 0.0
        %803 = vmatpush2.msra.mxu0 0.0
        %804 = vmatprep.subr.mxu0 0.0
        %805 = vmatpush2.msra.mxu0 0.0
        %806 = vmatprep.subr.mxu0 0.0
        %807 = vmatpush2.msra.mxu0 0.0
        %808 = vmatprep.subr.mxu0 0.0
        %809 = vmatpush2.msra.mxu0 0.0
        %810 = vmatprep.subr.mxu0 0.0
        %811 = vmatpush2.msra.mxu0 0.0
        %812 = vmatprep.subr.mxu0 0.0
        %813 = vmatpush2.msra.mxu0 0.0
        %814 = vmatprep.subr.mxu0 0.0
        %815 = vmatpush2.msra.mxu0 0.0
        %816 = vmatprep.subr.mxu0 0.0
        %817 = vmatpush2.msra.mxu0 0.0
        %818 = vmatprep.subr.mxu0 0.0
        %819 = vmatpush2.msra.mxu0 0.0
        %820 = vmatprep.subr.mxu0 0.0
        %821 = vmatpush2.msra.mxu0 0.0
        %822 = vmatprep.subr.mxu0 0.0
        %823 = vmatpush2.msra.mxu0 0.0
        %824 = vmatprep.subr.mxu0 0.0
        %825 = vmatpush2.msra.mxu0 0.0
        %826 = vmatprep.subr.mxu0 0.0
        %827 = vmatpush2.msra.mxu0 0.0
        %828 = vmatprep.subr.mxu0 0.0
        %829 = vmatpush2.msra.mxu0 0.0
        %830 = vmatprep.subr.mxu0 0.0
        %831 = vmatpush2.msra.mxu0 0.0
        %832 = vmatprep.subr.mxu0 0.0
        %833 = vmatpush2.msra.mxu0 0.0
        %834 = vmatprep.mubr.f32.mxu0 0.0
        %835 = vmatmul.mubr.f32.gmra.mxu0 %v739
        %v836 = vpop.f32.mrf.mxu0
        %v837 = vadd.f32 %v768, %v836
        %v838 = vpop.f32.mrf.mxu0
        %839 = vmatprep.mubr.f32.mxu0 0.0
        %840 = vmatmul.mubr.f32.gmra.mxu0 %v740
        %v841 = vpop.f32.mrf.mxu0
        %v842 = vadd.f32 %v768, %v841
        %v843 = vpop.f32.mrf.mxu0
        %844 = vmatprep.mubr.f32.mxu0 0.0
        %845 = vmatmul.mubr.f32.gmra.mxu0 %v741
        %v846 = vpop.f32.mrf.mxu0
        %v847 = vadd.f32 %v768, %v846
        %v848 = vpop.f32.mrf.mxu0
        %849 = vmatprep.mubr.f32.mxu0 0.0
        %850 = vmatmul.mubr.f32.gmra.mxu0 %v742
        %v851 = vpop.f32.mrf.mxu0
        %v852 = vadd.f32 %v768, %v851
        %v853 = vpop.f32.mrf.mxu0
        %854 = vmatprep.mubr.f32.mxu0 0.0
        %855 = vmatmul.mubr.f32.gmra.mxu0 %v743
        %v856 = vpop.f32.mrf.mxu0
        %v857 = vadd.f32 %v768, %v856
        %v858 = vpop.f32.mrf.mxu0
        %859 = vmatprep.mubr.f32.mxu0 0.0
        %860 = vmatmul.mubr.f32.gmra.mxu0 %v744
        %v861 = vpop.f32.mrf.mxu0
        %v862 = vadd.f32 %v768, %v861
        %v863 = vpop.f32.mrf.mxu0
        %864 = vmatprep.mubr.f32.mxu0 0.0
        %865 = vmatmul.mubr.f32.gmra.mxu0 %v745
        %v866 = vpop.f32.mrf.mxu0
        %v867 = vadd.f32 %v768, %v866
        %v868 = vpop.f32.mrf.mxu0
        %869 = vmatprep.mubr.f32.mxu0 0.0
        %870 = vmatmul.mubr.f32.gmra.mxu0 %v746
        %v871 = vpop.f32.mrf.mxu0
        %v872 = vadd.f32 %v768, %v871
        %v873 = vpop.f32.mrf.mxu0
        %874 = vdwg.mxu0
        %v875 = vmax.f32 %v837, 0.0
        %v876 = vmax.f32 %v842, 0.0
        %v877 = vmax.f32 %v847, 0.0
        %v878 = vmax.f32 %v852, 0.0
        %v879 = vmax.f32 %v857, 0.0
        %v880 = vmax.f32 %v862, 0.0
        %v881 = vmax.f32 %v867, 0.0
        %v882 = vmax.f32 %v872, 0.0
        %v883 = vld [vmem:[#allocation9] sm:$0xff]
        %v884 = vld [vmem:[#allocation9 + $0x8] sm:$0xff]
        %v885 = vld [vmem:[#allocation9 + $0x10] sm:$0xff]
        %v886 = vld [vmem:[#allocation9 + $0x18] sm:$0xff]
        %v887 = vld [vmem:[#allocation9 + $0x20] sm:$0xff]
        %v888 = vld [vmem:[#allocation9 + $0x28] sm:$0xff]
        %v889 = vld [vmem:[#allocation9 + $0x30] sm:$0xff]
        %v890 = vld [vmem:[#allocation9 + $0x38] sm:$0xff]
        %v891 = vld [vmem:[#allocation9 + $0x40] sm:$0xff]
        %v892 = vld [vmem:[#allocation9 + $0x48] sm:$0xff]
        %v893 = vld [vmem:[#allocation9 + $0x50] sm:$0xff]
        %v894 = vld [vmem:[#allocation9 + $0x58] sm:$0xff]
        %v895 = vld [vmem:[#allocation9 + $0x60] sm:$0xff]
        %v896 = vld [vmem:[#allocation9 + $0x68] sm:$0xff]
        %v897 = vld [vmem:[#allocation9 + $0x70] sm:$0xff]
        %v898 = vld [vmem:[#allocation9 + $0x78] sm:$0xff]
        %v899 = vld [vmem:[%s8] sm:$0x1]
        %v901 = vlaneseq
        %v902 = vshrl.u32 %v901, 7
        %v903 = vsub.s32 0, %v902
        %v904 = vrot.slane %v899, %v903
        %906 = vmatprep.subr.mxu0 0.0
        %907 = vmatpush1.msra.mxu0 %v898
        %908 = vmatprep.subr.mxu0 0.0
        %909 = vmatpush1.msra.mxu0 %v897
        %910 = vmatprep.subr.mxu0 0.0
        %911 = vmatpush1.msra.mxu0 %v896
        %912 = vmatprep.subr.mxu0 0.0
        %913 = vmatpush1.msra.mxu0 %v895
        %914 = vmatprep.subr.mxu0 0.0
        %915 = vmatpush1.msra.mxu0 %v894
        %916 = vmatprep.subr.mxu0 0.0
        %917 = vmatpush1.msra.mxu0 %v893
        %918 = vmatprep.subr.mxu0 0.0
        %919 = vmatpush1.msra.mxu0 %v892
        %920 = vmatprep.subr.mxu0 0.0
        %921 = vmatpush1.msra.mxu0 %v891
        %922 = vmatprep.subr.mxu0 0.0
        %923 = vmatpush1.msra.mxu0 %v890
        %924 = vmatprep.subr.mxu0 0.0
        %925 = vmatpush1.msra.mxu0 %v889
        %926 = vmatprep.subr.mxu0 0.0
        %927 = vmatpush1.msra.mxu0 %v888
        %928 = vmatprep.subr.mxu0 0.0
        %929 = vmatpush1.msra.mxu0 %v887
        %930 = vmatprep.subr.mxu0 0.0
        %931 = vmatpush1.msra.mxu0 %v886
        %932 = vmatprep.subr.mxu0 0.0
        %933 = vmatpush1.msra.mxu0 %v885
        %934 = vmatprep.subr.mxu0 0.0
        %935 = vmatpush1.msra.mxu0 %v884
        %936 = vmatprep.subr.mxu0 0.0
        %937 = vmatpush1.msra.mxu0 %v883
        %938 = vmatprep.subr.mxu0 0.0
        %939 = vmatpush2.msra.mxu0 0.0
        %940 = vmatprep.subr.mxu0 0.0
        %941 = vmatpush2.msra.mxu0 0.0
        %942 = vmatprep.subr.mxu0 0.0
        %943 = vmatpush2.msra.mxu0 0.0
        %944 = vmatprep.subr.mxu0 0.0
        %945 = vmatpush2.msra.mxu0 0.0
        %946 = vmatprep.subr.mxu0 0.0
        %947 = vmatpush2.msra.mxu0 0.0
        %948 = vmatprep.subr.mxu0 0.0
        %949 = vmatpush2.msra.mxu0 0.0
        %950 = vmatprep.subr.mxu0 0.0
        %951 = vmatpush2.msra.mxu0 0.0
        %952 = vmatprep.subr.mxu0 0.0
        %953 = vmatpush2.msra.mxu0 0.0
        %954 = vmatprep.subr.mxu0 0.0
        %955 = vmatpush2.msra.mxu0 0.0
        %956 = vmatprep.subr.mxu0 0.0
        %957 = vmatpush2.msra.mxu0 0.0
        %958 = vmatprep.subr.mxu0 0.0
        %959 = vmatpush2.msra.mxu0 0.0
        %960 = vmatprep.subr.mxu0 0.0
        %961 = vmatpush2.msra.mxu0 0.0
        %962 = vmatprep.subr.mxu0 0.0
        %963 = vmatpush2.msra.mxu0 0.0
        %964 = vmatprep.subr.mxu0 0.0
        %965 = vmatpush2.msra.mxu0 0.0
        %966 = vmatprep.subr.mxu0 0.0
        %967 = vmatpush2.msra.mxu0 0.0
        %968 = vmatprep.subr.mxu0 0.0
        %969 = vmatpush2.msra.mxu0 0.0
        %970 = vmatprep.mubr.f32.mxu0 0.0
        %971 = vmatmul.mubr.f32.gmra.mxu0 %v875
        %v972 = vpop.f32.mrf.mxu0
        %v973 = vadd.f32 %v904, %v972
        %v974 = vpop.f32.mrf.mxu0
        %975 = vmatprep.mubr.f32.mxu0 0.0
        %976 = vmatmul.mubr.f32.gmra.mxu0 %v876
        %v977 = vpop.f32.mrf.mxu0
        %v978 = vadd.f32 %v904, %v977
        %v979 = vpop.f32.mrf.mxu0
        %980 = vmatprep.mubr.f32.mxu0 0.0
        %981 = vmatmul.mubr.f32.gmra.mxu0 %v877
        %v982 = vpop.f32.mrf.mxu0
        %v983 = vadd.f32 %v904, %v982
        %v984 = vpop.f32.mrf.mxu0
        %985 = vmatprep.mubr.f32.mxu0 0.0
        %986 = vmatmul.mubr.f32.gmra.mxu0 %v878
        %v987 = vpop.f32.mrf.mxu0
        %v988 = vadd.f32 %v904, %v987
        %v989 = vpop.f32.mrf.mxu0
        %990 = vmatprep.mubr.f32.mxu0 0.0
        %991 = vmatmul.mubr.f32.gmra.mxu0 %v879
        %v992 = vpop.f32.mrf.mxu0
        %v993 = vadd.f32 %v904, %v992
        %v994 = vpop.f32.mrf.mxu0
        %995 = vmatprep.mubr.f32.mxu0 0.0
        %996 = vmatmul.mubr.f32.gmra.mxu0 %v880
        %v997 = vpop.f32.mrf.mxu0
        %v998 = vadd.f32 %v904, %v997
        %v999 = vpop.f32.mrf.mxu0
        %1000 = vmatprep.mubr.f32.mxu0 0.0
        %1001 = vmatmul.mubr.f32.gmra.mxu0 %v881
        %v1002 = vpop.f32.mrf.mxu0
        %v1003 = vadd.f32 %v904, %v1002
        %v1004 = vpop.f32.mrf.mxu0
        %1005 = vmatprep.mubr.f32.mxu0 0.0
        %1006 = vmatmul.mubr.f32.gmra.mxu0 %v882
        %v1007 = vpop.f32.mrf.mxu0
        %v1008 = vadd.f32 %v904, %v1007
        %v1009 = vpop.f32.mrf.mxu0
        %1010 = vdwg.mxu0
        %v1011 = vmax.f32 %v973, 0.0
        %v1012 = vmax.f32 %v978, 0.0
        %v1013 = vmax.f32 %v983, 0.0
        %v1014 = vmax.f32 %v988, 0.0
        %v1015 = vmax.f32 %v993, 0.0
        %v1016 = vmax.f32 %v998, 0.0
        %v1017 = vmax.f32 %v1003, 0.0
        %v1018 = vmax.f32 %v1008, 0.0
        %v1019 = vld [vmem:[%s9] sm:$0x1]
        %v1021 = vlaneseq
        %v1022 = vshrl.u32 %v1021, 7
        %v1023 = vsub.s32 0, %v1022
        %v1024 = vrot.slane %v1019, %v1023
        %v1026 = vmul.f32 %v1011, %v1024
        %v1027 = vmul.f32 %v1012, %v1024
        %v1028 = vmul.f32 %v1013, %v1024
        %v1029 = vmul.f32 %v1014, %v1024
        %v1030 = vmul.f32 %v1015, %v1024
        %v1031 = vmul.f32 %v1016, %v1024
        %v1032 = vmul.f32 %v1017, %v1024
        %v1033 = vmul.f32 %v1018, %v1024
        %vm1034 = vcmask 261120
        %v1035 = vsel %vm1034, %v1026, 0.0
        %1036 = vadd.xlane.f32.xlu0 %v1035
        %v1037 = vpop.xlane.xlu0 %1036
        %v1038 = vsel %vm1034, %v1027, 0.0
        %1039 = vadd.xlane.f32.xlu0 %v1038
        %v1040 = vpop.xlane.xlu0 %1039
        %v1041 = vsel %vm1034, %v1028, 0.0
        %1042 = vadd.xlane.f32.xlu0 %v1041
        %v1043 = vpop.xlane.xlu0 %1042
        %v1044 = vsel %vm1034, %v1029, 0.0
        %1045 = vadd.xlane.f32.xlu0 %v1044
        %v1046 = vpop.xlane.xlu0 %1045
        %v1047 = vsel %vm1034, %v1030, 0.0
        %1048 = vadd.xlane.f32.xlu0 %v1047
        %v1049 = vpop.xlane.xlu0 %1048
        %v1050 = vsel %vm1034, %v1031, 0.0
        %1051 = vadd.xlane.f32.xlu0 %v1050
        %v1052 = vpop.xlane.xlu0 %1051
        %v1053 = vsel %vm1034, %v1032, 0.0
        %1054 = vadd.xlane.f32.xlu0 %v1053
        %v1055 = vpop.xlane.xlu0 %1054
        %v1056 = vsel %vm1034, %v1033, 0.0
        %1057 = vadd.xlane.f32.xlu0 %v1056
        %v1058 = vpop.xlane.xlu0 %1057
        %1067 = vrot.lane.b32.xlu0 %v1026, 96
        %v1068 = vpop.permute.xlu0 %1067
        %1069 = vrot.lane.b32.xlu0 %v1027, 96
        %v1070 = vpop.permute.xlu0 %1069
        %1071 = vrot.lane.b32.xlu0 %v1028, 96
        %v1072 = vpop.permute.xlu0 %1071
        %1073 = vrot.lane.b32.xlu0 %v1029, 96
        %v1074 = vpop.permute.xlu0 %1073
        %1075 = vrot.lane.b32.xlu0 %v1030, 96
        %v1076 = vpop.permute.xlu0 %1075
        %1077 = vrot.lane.b32.xlu0 %v1031, 96
        %v1078 = vpop.permute.xlu0 %1077
        %1079 = vrot.lane.b32.xlu0 %v1032, 96
        %v1080 = vpop.permute.xlu0 %1079
        %1081 = vrot.lane.b32.xlu0 %v1033, 96
        %v1082 = vpop.permute.xlu0 %1081
        %v1091 = vsel %vm1034, %v1068, 0.0
        %1092 = vadd.xlane.f32.xlu0 %v1091
        %v1093 = vpop.xlane.xlu0 %1092
        %v1094 = vsel %vm1034, %v1070, 0.0
        %1095 = vadd.xlane.f32.xlu0 %v1094
        %v1096 = vpop.xlane.xlu0 %1095
        %v1097 = vsel %vm1034, %v1072, 0.0
        %1098 = vadd.xlane.f32.xlu0 %v1097
        %v1099 = vpop.xlane.xlu0 %1098
        %v1100 = vsel %vm1034, %v1074, 0.0
        %1101 = vadd.xlane.f32.xlu0 %v1100
        %v1102 = vpop.xlane.xlu0 %1101
        %v1103 = vsel %vm1034, %v1076, 0.0
        %1104 = vadd.xlane.f32.xlu0 %v1103
        %v1105 = vpop.xlane.xlu0 %1104
        %v1106 = vsel %vm1034, %v1078, 0.0
        %1107 = vadd.xlane.f32.xlu0 %v1106
        %v1108 = vpop.xlane.xlu0 %1107
        %v1109 = vsel %vm1034, %v1080, 0.0
        %1110 = vadd.xlane.f32.xlu0 %v1109
        %v1111 = vpop.xlane.xlu0 %1110
        %v1112 = vsel %vm1034, %v1082, 0.0
        %1113 = vadd.xlane.f32.xlu0 %v1112
        %v1114 = vpop.xlane.xlu0 %1113
        %1115 = vrot.lane.b32.xlu0 %v1026, 64
        %v1116 = vpop.permute.xlu0 %1115
        %1117 = vrot.lane.b32.xlu0 %v1027, 64
        %v1118 = vpop.permute.xlu0 %1117
        %1119 = vrot.lane.b32.xlu0 %v1028, 64
        %v1120 = vpop.permute.xlu0 %1119
        %1121 = vrot.lane.b32.xlu0 %v1029, 64
        %v1122 = vpop.permute.xlu0 %1121
        %1123 = vrot.lane.b32.xlu0 %v1030, 64
        %v1124 = vpop.permute.xlu0 %1123
        %1125 = vrot.lane.b32.xlu0 %v1031, 64
        %v1126 = vpop.permute.xlu0 %1125
        %1127 = vrot.lane.b32.xlu0 %v1032, 64
        %v1128 = vpop.permute.xlu0 %1127
        %1129 = vrot.lane.b32.xlu0 %v1033, 64
        %v1130 = vpop.permute.xlu0 %1129
        %v1139 = vsel %vm1034, %v1116, 0.0
        %1140 = vadd.xlane.f32.xlu0 %v1139
        %v1141 = vpop.xlane.xlu0 %1140
        %v1142 = vsel %vm1034, %v1118, 0.0
        %1143 = vadd.xlane.f32.xlu0 %v1142
        %v1144 = vpop.xlane.xlu0 %1143
        %v1145 = vsel %vm1034, %v1120, 0.0
        %1146 = vadd.xlane.f32.xlu0 %v1145
        %v1147 = vpop.xlane.xlu0 %1146
        %v1148 = vsel %vm1034, %v1122, 0.0
        %1149 = vadd.xlane.f32.xlu0 %v1148
        %v1150 = vpop.xlane.xlu0 %1149
        %v1151 = vsel %vm1034, %v1124, 0.0
        %1152 = vadd.xlane.f32.xlu0 %v1151
        %v1153 = vpop.xlane.xlu0 %1152
        %v1154 = vsel %vm1034, %v1126, 0.0
        %1155 = vadd.xlane.f32.xlu0 %v1154
        %v1156 = vpop.xlane.xlu0 %1155
        %v1157 = vsel %vm1034, %v1128, 0.0
        %1158 = vadd.xlane.f32.xlu0 %v1157
        %v1159 = vpop.xlane.xlu0 %1158
        %v1160 = vsel %vm1034, %v1130, 0.0
        %1161 = vadd.xlane.f32.xlu0 %v1160
        %v1162 = vpop.xlane.xlu0 %1161
        %1163 = vrot.lane.b32.xlu0 %v1026, 32
        %v1164 = vpop.permute.xlu0 %1163
        %1165 = vrot.lane.b32.xlu0 %v1027, 32
        %v1166 = vpop.permute.xlu0 %1165
        %1167 = vrot.lane.b32.xlu0 %v1028, 32
        %v1168 = vpop.permute.xlu0 %1167
        %1169 = vrot.lane.b32.xlu0 %v1029, 32
        %v1170 = vpop.permute.xlu0 %1169
        %1171 = vrot.lane.b32.xlu0 %v1030, 32
        %v1172 = vpop.permute.xlu0 %1171
        %1173 = vrot.lane.b32.xlu0 %v1031, 32
        %v1174 = vpop.permute.xlu0 %1173
        %1175 = vrot.lane.b32.xlu0 %v1032, 32
        %v1176 = vpop.permute.xlu0 %1175
        %1177 = vrot.lane.b32.xlu0 %v1033, 32
        %v1178 = vpop.permute.xlu0 %1177
        %v1187 = vsel %vm1034, %v1164, 0.0
        %1188 = vadd.xlane.f32.xlu0 %v1187
        %v1189 = vpop.xlane.xlu0 %1188
        %v1190 = vsel %vm1034, %v1166, 0.0
        %1191 = vadd.xlane.f32.xlu0 %v1190
        %v1192 = vpop.xlane.xlu0 %1191
        %v1193 = vsel %vm1034, %v1168, 0.0
        %1194 = vadd.xlane.f32.xlu0 %v1193
        %v1195 = vpop.xlane.xlu0 %1194
        %v1196 = vsel %vm1034, %v1170, 0.0
        %1197 = vadd.xlane.f32.xlu0 %v1196
        %v1198 = vpop.xlane.xlu0 %1197
        %v1199 = vsel %vm1034, %v1172, 0.0
        %1200 = vadd.xlane.f32.xlu0 %v1199
        %v1201 = vpop.xlane.xlu0 %1200
        %v1202 = vsel %vm1034, %v1174, 0.0
        %1203 = vadd.xlane.f32.xlu0 %v1202
        %v1204 = vpop.xlane.xlu0 %1203
        %v1205 = vsel %vm1034, %v1176, 0.0
        %1206 = vadd.xlane.f32.xlu0 %v1205
        %v1207 = vpop.xlane.xlu0 %1206
        %v1208 = vsel %vm1034, %v1178, 0.0
        %1209 = vadd.xlane.f32.xlu0 %v1208
        %v1210 = vpop.xlane.xlu0 %1209
        %vm1211 = vcmask 7168
        %v1212 = vsel %vm1211, %v1037, %v1093
        %v1213 = vsel %vm1211, %v1040, %v1096
        %v1214 = vsel %vm1211, %v1043, %v1099
        %v1215 = vsel %vm1211, %v1046, %v1102
        %v1216 = vsel %vm1211, %v1049, %v1105
        %v1217 = vsel %vm1211, %v1052, %v1108
        %v1218 = vsel %vm1211, %v1055, %v1111
        %v1219 = vsel %vm1211, %v1058, %v1114
        %vm1220 = vcmask 15360
        %v1221 = vsel %vm1220, %v1212, %v1141
        %v1222 = vsel %vm1220, %v1213, %v1144
        %v1223 = vsel %vm1220, %v1214, %v1147
        %v1224 = vsel %vm1220, %v1215, %v1150
        %v1225 = vsel %vm1220, %v1216, %v1153
        %v1226 = vsel %vm1220, %v1217, %v1156
        %v1227 = vsel %vm1220, %v1218, %v1159
        %v1228 = vsel %vm1220, %v1219, %v1162
        %vm1229 = vcmask 23552
        %v1230 = vsel %vm1229, %v1221, %v1189
        %v1231 = vsel %vm1229, %v1222, %v1192
        %v1232 = vsel %vm1229, %v1223, %v1195
        %v1233 = vsel %vm1229, %v1224, %v1198
        %v1234 = vsel %vm1229, %v1225, %v1201
        %v1235 = vsel %vm1229, %v1226, %v1204
        %v1236 = vsel %vm1229, %v1227, %v1207
        %v1237 = vsel %vm1229, %v1228, %v1210
        %v1238 = vld [vmem:[%s10] sm:$0x1]
        %v1240 = vlaneseq
        %v1241 = vshrl.u32 %v1240, 7
        %v1242 = vsub.s32 0, %v1241
        %v1243 = vrot.slane %v1238, %v1242
        %v1245 = vadd.f32 %v1230, %v1243
        %v1246 = vadd.f32 %v1231, %v1243
        %v1247 = vadd.f32 %v1232, %v1243
        %v1248 = vadd.f32 %v1233, %v1243
        %v1249 = vadd.f32 %v1234, %v1243
        %v1250 = vadd.f32 %v1235, %v1243
        %v1251 = vadd.f32 %v1236, %v1243
        %v1252 = vadd.f32 %v1237, %v1243
        %vm1253 = vcmask 31744
        %1254 = vst.msk [vmem:[%s465] sm:$0xff] %vm1253, %v1245
        %1255 = vst.msk [vmem:[%s465 + $0x8] sm:$0xff] %vm1253, %v1246
        %1256 = vst.msk [vmem:[%s465 + $0x10] sm:$0xff] %vm1253, %v1247
        %1257 = vst.msk [vmem:[%s465 + $0x18] sm:$0xff] %vm1253, %v1248
        %1258 = vst.msk [vmem:[%s465 + $0x20] sm:$0xff] %vm1253, %v1249
        %1259 = vst.msk [vmem:[%s465 + $0x28] sm:$0xff] %vm1253, %v1250
        %1260 = vst.msk [vmem:[%s465 + $0x30] sm:$0xff] %vm1253, %v1251
        %1261 = vst.msk [vmem:[%s465 + $0x38] sm:$0xff] %vm1253, %v1252
        %s1262 = smul.u32 8, %s27
        %p1263 = scmp.lt.s32.totalorder %s1262, 31
        %s1264 = scalar_select %p1263, %s1262, 31
        %s1265 = smul.addr %s1264, 8
        %s1266 = scalar_lea.vmem %s11, %s1265
        // Predicated region
        $region85: #{tpu_custom_call.1} parent=63 // pred_check
          %p1267 = pneg %p281
        $region86: #{tpu_custom_call.1} parent=63 // pred_check_branch
          %1269 = sbr.rel (%p1267) target = $region88
        $region87: #{tpu_custom_call.1} parent=63 // pred_region
          %s1270 = smul.u32 8, %s27
        $region88: #{tpu_custom_call.1} parent=63 // pred_fallthru
          _
      $region64: #{tpu_custom_call.1} parent=5 // pred_fallthru
        _
      %p1271 = scmp.le.s32.totalorder 2, %s22
      // Predicated region
      $region89: #{tpu_custom_call.1} parent=5 // pred_check
        %p1272 = pneg %p1271
      $region90: #{tpu_custom_call.1} parent=5 // pred_check_branch
        %1274 = sbr.rel (%p1272) target = $region92
      $region91: #{tpu_custom_call.1} parent=5 // pred_region
        %s1275 = ssub.s32 %s22, 2
        // Predicated region
        $region93: #{tpu_custom_call.1} parent=91 // pred_check
          %p1276 = pneg %p287
        $region94: #{tpu_custom_call.1} parent=91 // pred_check_branch
          %1278 = sbr.rel (%p1276) target = $region96
        $region95: #{tpu_custom_call.1} parent=91 // pred_region
          %s1279 = smul.u32 8, %s28
          %p1280 = scmp.lt.s32.totalorder %s1279, 31
          %s1281 = scalar_select %p1280, %s1279, 31
          %s1282 = smul.addr %s1281, 8
          %s1283 = scalar_lea.vmem %s11, %s1282
        $region96: #{tpu_custom_call.1} parent=91 // pred_fallthru
          _
      $region92: #{tpu_custom_call.1} parent=5 // pred_fallthru
        _
    $region6: #{tpu_custom_call.1} parent=1 // loop_footer
      %s26 = sadd.s32 1, %s22
    $region7: #{tpu_custom_call.1} parent=1 // loop_footer_branch
      %21 = sbr.rel target = $region3
    $region8: #{tpu_custom_call.1} parent=1 // loop_exit
      _
    %1284 = vsyncpa [#allocation3], 1
    %s1285 = scalar_lea.sflag [#allocation3], 1
    %1286 = vsyncpa %s1285, 1
    %1287 = vsyncpa [#allocation5], 1
    %1288 = vsyncpa [#allocation8], 1

</llo_original>
